<compile_context>
chip_gen: v5e
topology: v5e:2x2
jax: 0.10.0
libtpu: 0.0.40
codegen_flags: <defaults>
</compile_context>

<pallas_src>
import functools

import jax
import jax.numpy as jnp
from jax.experimental import pallas as pl
from jax.experimental.pallas import tpu as pltpu


_STREAM_BLOCK_BYTES = 4 * 1024 * 1024   # ~4 MiB of input bytes per streamed block
_VMEM_WORK_BYTES = 40 * 1024 * 1024     # blocks + f32 temporaries budget (v7x-safe)


def _tv_loss_kernel(ia_ref, if_ref, w_ref, out_ref, *, W, NC, TB, need_row_mask):
    """One grid step: (TB, H*W) slab of both inputs -> (1, 1, H*W) lane partials."""
    hw = ia_ref.shape[1]

    r = ia_ref[...].astype(jnp.float32) - if_ref[...].astype(jnp.float32)

    if need_row_mask:
        # Only when TB does not divide N*C (the planner avoids this when it can):
        # zero the padded rows of r once; the rolls below are per-row, so zeroed
        # rows contribute exactly 0 to both terms.
        row = jax.lax.broadcasted_iota(jnp.int32, r.shape, 0)
        r = jnp.where(row + pl.program_id(0) * TB < NC, r, 0.0)

    # Neighbour differences via XLU lane rotation (out[j] = in[(j - shift) % hw]).
    dv = pltpu.roll(r, hw - W, axis=1) - r    # vertical neighbour  r[j + W]
    dh = pltpu.roll(r, hw - 1, axis=1) - r    # horizontal neighbour r[j + 1]

    # Resident weights: validity mask with 1/count folded in -> the two masked
    # means collapse into a single fused weighted reduction.
    wv = w_ref[0:1, :]
    wh = w_ref[1:2, :]
    term = dv * dv * wv + dh * dh * wh

    # Reduce only over sublanes; leave a lane-resident partial per block.
    out_ref[...] = jnp.sum(term, axis=0, keepdims=True)[None]


def _plan(NC, HW, in_itemsize, block_rows):
    """Pick block rows TB, whether remainder-row masking is needed, and a derived
    scoped-VMEM limit."""
    row_in_bytes = HW * in_itemsize
    # Per block row on chip: 2 inputs x 2 pipeline buffers (input dtype) plus
    # ~6 f32-sized temporaries (r, dv, dh, squares / weighted terms).
    row_vmem_bytes = 4 * row_in_bytes + 6 * HW * 4

    min_rows = NC if NC < 8 else 8
    if min_rows * row_vmem_bytes > _VMEM_WORK_BYTES:
        raise NotImplementedError(
            "TV_Loss Pallas kernel: a minimum (%d, %d) block does not fit the "
            "VMEM budget; a halo'd spatial split is required for this image size."
            % (min_rows, HW))

    if block_rows is not None:
        tb = max(1, min(int(block_rows), NC))
        if tb < NC:
            tb = min(NC, max(8, (tb // 8) * 8))   # 8-aligned second-minor block dim
    else:
        tb = min(
            max(1, _STREAM_BLOCK_BYTES // row_in_bytes),   # HBM-streaming target
            max(1, _VMEM_WORK_BYTES // row_vmem_bytes),    # on-chip budget
            NC,
        )
        # Keep >= 4 grid steps when there is enough work so the "parallel" axis
        # shards across both v7x TensorCores and double-buffering can overlap.
        if NC >= 32:
            tb = min(tb, NC // 4)
        elif NC >= 16:
            tb = min(tb, NC // 2)
        if tb < NC:
            tb = min(NC, max(8, (tb // 8) * 8))
            # Prefer a TB that divides N*C exactly (no remainder-row masking),
            # but never shrink the block by more than ~2x to get one.
            if NC % tb != 0:
                for d in range(tb - 8, max(8, tb // 2) - 1, -8):
                    if NC % d == 0:
                        tb = d
                        break

    need_row_mask = (NC % tb) != 0
    vmem_need = (tb * row_vmem_bytes      # streamed blocks + temporaries
                 + 2 * 2 * HW * 4         # resident weights (double-buffered)
                 + 2 * HW * 4             # lane-partial output block
                 + (2 << 20))             # slack
    vmem_limit = int(min(52 * 1024 * 1024, max(24 * 1024 * 1024, vmem_need)))
    return tb, need_row_mask, vmem_limit


def tv_loss(IA, IF, *, block_rows=None):
    """TV_Loss.forward(IA, IF): scalar float32, matching the PyTorch semantics."""
    assert IA.shape == IF.shape and IA.ndim == 4
    N, C, H, W = IA.shape
    NC, HW = N * C, H * W

    count_v = NC * (H - 1) * W
    count_h = NC * H * (W - 1)
    inv_v = (1.0 / count_v) if count_v > 0 else 0.0
    inv_h = (1.0 / count_h) if count_h > 0 else 0.0

    # Resident 1/count-folded validity weights: row 0 vertical, row 1 horizontal.
    col = jnp.arange(HW, dtype=jnp.int32)
    wv = jnp.where(col < HW - W, jnp.float32(inv_v), jnp.float32(0.0))
    wh = jnp.where(col % W != W - 1, jnp.float32(inv_h), jnp.float32(0.0))
    weights = jnp.stack([wv, wh], axis=0)               # (2, HW) float32

    ia = IA.reshape(NC, HW)      # free: contiguous row-major reshape
    ifl = IF.reshape(NC, HW)

    itemsize = jnp.dtype(IA.dtype).itemsize
    TB, need_row_mask, vmem_limit = _plan(NC, HW, itemsize, block_rows)
    num_blocks = pl.cdiv(NC, TB)

    kernel = functools.partial(
        _tv_loss_kernel, W=W, NC=NC, TB=TB, need_row_mask=need_row_mask)

    partials = pl.pallas_call(
        kernel,
        out_shape=jax.ShapeDtypeStruct((num_blocks, 1, HW), jnp.float32),
        grid_spec=pltpu.PrefetchScalarGridSpec(
            num_scalar_prefetch=0,
            grid=(num_blocks,),
            in_specs=[
                pl.BlockSpec((TB, HW), lambda i: (i, 0)),
                pl.BlockSpec((TB, HW), lambda i: (i, 0)),
                pl.BlockSpec((2, HW), lambda i: (0, 0)),   # resident weights
            ],
            out_specs=pl.BlockSpec((1, 1, HW), lambda i: (i, 0, 0)),
        ),
        compiler_params=pltpu.CompilerParams(
            dimension_semantics=("parallel",),
            vmem_limit_bytes=vmem_limit,
        ),
    )(ia, ifl, weights)

    total = jnp.sum(partials)
    if count_v == 0 or count_h == 0:
        # PyTorch's mean over an empty slice is NaN; preserve that edge case.
        total = total + jnp.float32(float("nan"))
    return total


def _tv_loss_ref(IA, IF):
    r = IA.astype(jnp.float32) - IF.astype(jnp.float32)
    tv1 = jnp.mean((r[:, :, 1:, :] - r[:, :, :-1, :]) ** 2)
    tv2 = jnp.mean((r[:, :, :, 1:] - r[:, :, :, :-1]) ** 2)
    return tv1 + tv2


if __name__ == "__main__":
    key = jax.random.PRNGKey(0)
    k1, k2, k3, k4 = jax.random.split(key, 4)

    # Case 1: nominal small shape (auto block planning, divisor TB, no row mask).
    IA = jax.random.normal(k1, (2, 4, 16, 16), dtype=jnp.float32)
    IF = jax.random.normal(k2, (2, 4, 16, 16), dtype=jnp.float32)
    out = jax.block_until_ready(tv_loss(IA, IF))
    ref = _tv_loss_ref(IA, IF)
    assert jnp.allclose(out, ref, rtol=1e-5, atol=1e-5), (out, ref)

    # Case 2: multiple blocks + remainder rows (exercises the row-mask path and
    # the per-block lane-partial outputs).
    IA2 = jax.random.normal(k3, (5, 4, 16, 16), dtype=jnp.float32)
    IF2 = jax.random.normal(k4, (5, 4, 16, 16), dtype=jnp.float32)
    out2 = jax.block_until_ready(tv_loss(IA2, IF2, block_rows=8))
    ref2 = _tv_loss_ref(IA2, IF2)
    assert jnp.allclose(out2, ref2, rtol=1e-5, atol=1e-5), (out2, ref2)

    # Case 3: bf16 inputs (dtype-aware streaming; f32 math in VMEM).
    IA3 = jax.random.normal(k1, (2, 4, 16, 16), dtype=jnp.bfloat16)
    IF3 = jax.random.normal(k2, (2, 4, 16, 16), dtype=jnp.bfloat16)
    out3 = jax.block_until_ready(tv_loss(IA3, IF3))
    ref3 = _tv_loss_ref(IA3, IF3)
    assert jnp.allclose(out3, ref3, rtol=1e-4, atol=1e-4), (out3, ref3)

    print("KERNEL_OK")
</pallas_src>

<mosaic_0001>
module attributes {stable_mosaic.version = 11 : i64} {
  func.func @_tv_loss_kernel(%arg0: i32, %arg1: memref<8x256xf32, #tpu.memory_space<vmem>>, %arg2: memref<8x256xf32, #tpu.memory_space<vmem>>, %arg3: memref<2x256xf32, #tpu.memory_space<vmem>>, %arg4: memref<1x1x256xf32, #tpu.memory_space<vmem>>) attributes {dimension_semantics = [#tpu.dimension_semantics<parallel>], iteration_bounds = array<i64: 1>, scalar_prefetch = 0 : i64, scratch_operands = 0 : i64, tpu.core_type = #tpu.core_type<tc>, window_params = [{transform_indices = @transform_0, window_bounds = array<i64: 8, 256>}, {transform_indices = @transform_1, window_bounds = array<i64: 8, 256>}, {pipeline_mode = #tpu.pipeline_mode<synchronous>, transform_indices = @transform_2, window_bounds = array<i64: 2, 256>}, {transform_indices = @transform_3, window_bounds = array<i64: 1, 1, 256>}]} {
    %c0 = arith.constant 0 : index
    %c0_0 = arith.constant 0 : index
    %0 = vector.load %arg1[%c0, %c0_0] : memref<8x256xf32, #tpu.memory_space<vmem>>, vector<8x256xf32>
    %c0_1 = arith.constant 0 : index
    %c0_2 = arith.constant 0 : index
    %1 = vector.load %arg2[%c0_1, %c0_2] : memref<8x256xf32, #tpu.memory_space<vmem>>, vector<8x256xf32>
    %2 = arith.subf %0, %1 : vector<8x256xf32>
    %c240_i32 = arith.constant 240 : i32
    %3 = tpu.dynamic_rotate %2 by %c240_i32 dim 1 : vector<8x256xf32>, i32 -> vector<8x256xf32>
    %4 = arith.subf %3, %2 : vector<8x256xf32>
    %c255_i32 = arith.constant 255 : i32
    %5 = tpu.dynamic_rotate %2 by %c255_i32 dim 1 : vector<8x256xf32>, i32 -> vector<8x256xf32>
    %6 = arith.subf %5, %2 : vector<8x256xf32>
    %c0_3 = arith.constant 0 : index
    %c0_4 = arith.constant 0 : index
    %7 = vector.load %arg3[%c0_3, %c0_4] : memref<2x256xf32, #tpu.memory_space<vmem>>, vector<1x256xf32>
    %c1 = arith.constant 1 : index
    %c0_5 = arith.constant 0 : index
    %8 = vector.load %arg3[%c1, %c0_5] : memref<2x256xf32, #tpu.memory_space<vmem>>, vector<1x256xf32>
    %9 = arith.mulf %4, %4 : vector<8x256xf32>
    %10 = vector.broadcast %7 : vector<1x256xf32> to vector<8x256xf32>
    %11 = arith.mulf %9, %10 : vector<8x256xf32>
    %12 = arith.mulf %6, %6 : vector<8x256xf32>
    %13 = vector.broadcast %8 : vector<1x256xf32> to vector<8x256xf32>
    %14 = arith.mulf %12, %13 : vector<8x256xf32>
    %15 = arith.addf %11, %14 : vector<8x256xf32>
    %cst = arith.constant dense<0.000000e+00> : vector<256xf32>
    %16 = vector.multi_reduction <add>, %15, %cst [0] : vector<8x256xf32> to vector<256xf32>
    %17 = vector.shape_cast %16 : vector<256xf32> to vector<1x256xf32>
    %18 = vector.shape_cast %17 : vector<1x256xf32> to vector<1x1x256xf32>
    %c0_6 = arith.constant 0 : index
    %c0_7 = arith.constant 0 : index
    %c0_8 = arith.constant 0 : index
    %19 = vector.load %arg4[%c0_6, %c0_7, %c0_8] : memref<1x1x256xf32, #tpu.memory_space<vmem>>, vector<1x1x256xf32>
    tpu.vector_store %arg4[%c0_6, %c0_7, %c0_8], %18 {strides = array<i32>} : memref<1x1x256xf32, #tpu.memory_space<vmem>>, vector<1x1x256xf32>,
    return
  }
  func.func @transform_0(%arg0: i32) -> (i32, i32) {
    %c0_i32 = arith.constant 0 : i32
    %c0_i32_0 = arith.constant 0 : i32
    return %arg0, %c0_i32 : i32, i32
  }
  func.func @transform_1(%arg0: i32) -> (i32, i32) {
    %c0_i32 = arith.constant 0 : i32
    %c0_i32_0 = arith.constant 0 : i32
    return %arg0, %c0_i32 : i32, i32
  }
  func.func @transform_2(%arg0: i32) -> (i32, i32) {
    %c0_i32 = arith.constant 0 : i32
    %c0_i32_0 = arith.constant 0 : i32
    %c0_i32_1 = arith.constant 0 : i32
    return %c0_i32, %c0_i32_0 : i32, i32
  }
  func.func @transform_3(%arg0: i32) -> (i32, i32, i32) {
    %c0_i32 = arith.constant 0 : i32
    %c0_i32_0 = arith.constant 0 : i32
    %c0_i32_1 = arith.constant 0 : i32
    return %arg0, %c0_i32, %c0_i32_0 : i32, i32, i32
  }
}

</mosaic_0001>

<llo_original>
// kernel: tpu_custom_call.1
$region0: #{tpu_custom_call.1}
  #allocation0 [shape = 'u32[]', space=smem, size = 0x4, offset = 0x4, fixed_abs, tag = 'smem constant byte address 0x4 - core index']
  #allocation1 [shape = 'u32[72,128]{1,0:T(1,128)}', space=vmem, size = 0x9000, scoped, tag = 'internal scratch']
  %s0 = inlined_call_operand.hbm [shape: f32[8,256], index: 0, kind: input, shape index: {}]
  %s1 = inlined_call_operand.hbm [shape: f32[8,256], index: 1, kind: input, shape index: {}]
  %s2 = inlined_call_operand.hbm [shape: f32[2,256], index: 2, kind: input, shape index: {}]
  %s3 = inlined_call_operand.hbm [shape: f32[1,1,256], index: 3, kind: output, shape index: {}]
  %s4 = sld [smem:[#allocation0]]
  $region34: #{tpu_custom_call.1} parent=0
    _
  %s6 = ssub.s32 1, %s4
  %s7 = scalar_select 0, %s6, %s4
  $region1: #{tpu_custom_call.1} parent=0
    #allocation2 [shape = 'u8[8192]{0}', space=vmem, size = 0x2000, scoped, tag = 'input window, operand 0, single buffered']
    #allocation3 [shape = 's32[1]{0}', space=sflag, size = 0x4, scoped, tag = 'scoped memory for tpu_custom_call.1']
    #allocation4 [shape = 's32[1]{0}', space=sflag, size = 0x4, scoped, tag = 'scoped memory for tpu_custom_call.1']
    #allocation5 [shape = 'u8[8192]{0}', space=vmem, size = 0x2000, scoped, tag = 'input window, operand 1, single buffered']
    #allocation6 [shape = 's32[1]{0}', space=sflag, size = 0x4, scoped, tag = 'scoped memory for tpu_custom_call.1']
    #allocation7 [shape = 'u8[2048]{0}', space=vmem, size = 0x800, scoped, tag = 'input window, operand 2, single buffered']
    #allocation8 [shape = 'u8[1024]{0}', space=vmem, size = 0x400, scoped, tag = 'output window, operand 0, single buffered']
    %8 = vsyncpa [#allocation3], 0
    %9 = vsyncpa [#allocation6], 0
    %10 = vsyncpa [#allocation4], 0
    // Predicated region
    $region2: #{tpu_custom_call.1} parent=1 // pred_check
      _
    $region3: #{tpu_custom_call.1} parent=1 // pred_check_branch
      %12 = sbr.rel (0) target = $region5
    $region4: #{tpu_custom_call.1} parent=1 // pred_region
      %14 = vsyncadd [#allocation3], 0
      %s16 = sshll.u32 %s0, 4
      %s17 = int_to_ptr.hbm [resolvable:$true] %s16
      %s18 = sshll.u32 [#allocation2], 4
      %s19 = int_to_ptr.vmem [resolvable:$true] %s18
      %21 = dma.hbm_to_vmem [thread:$0]  %s17, 256, %s19, [#allocation3]
    $region5: #{tpu_custom_call.1} parent=1 // pred_fallthru
      _
    // Predicated region
    $region6: #{tpu_custom_call.1} parent=1 // pred_check
      _
    $region7: #{tpu_custom_call.1} parent=1 // pred_check_branch
      %23 = sbr.rel (0) target = $region9
    $region8: #{tpu_custom_call.1} parent=1 // pred_region
      %25 = vsyncadd [#allocation6], 0
      %s27 = sshll.u32 %s1, 4
      %s28 = int_to_ptr.hbm [resolvable:$true] %s27
      %s29 = sshll.u32 [#allocation5], 4
      %s30 = int_to_ptr.vmem [resolvable:$true] %s29
      %32 = dma.hbm_to_vmem [thread:$0]  %s28, 256, %s30, [#allocation6]
    $region9: #{tpu_custom_call.1} parent=1 // pred_fallthru
      _
    // Predicated region
    $region10: #{tpu_custom_call.1} parent=1 // pred_check
      _
    $region11: #{tpu_custom_call.1} parent=1 // pred_check_branch
      %34 = sbr.rel (0) target = $region13
    $region12: #{tpu_custom_call.1} parent=1 // pred_region
      %36 = vsyncadd [#allocation6], 0
      %s38 = sshll.u32 %s2, 4
      %s39 = int_to_ptr.hbm [resolvable:$true] %s38
      %s40 = sshll.u32 [#allocation7], 4
      %s41 = int_to_ptr.vmem [resolvable:$true] %s40
      %43 = dma.hbm_to_vmem [thread:$0]  %s39, 64, %s41, [#allocation6]
    $region13: #{tpu_custom_call.1} parent=1 // pred_fallthru
      _
    // Predicated region
    $region14: #{tpu_custom_call.1} parent=1 // pred_check
      _
    $region15: #{tpu_custom_call.1} parent=1 // pred_check_branch
      %45 = sbr.rel (0) target = $region17
    $region16: #{tpu_custom_call.1} parent=1 // pred_region
      %47 = dma.done [#allocation3], 256
    $region17: #{tpu_custom_call.1} parent=1 // pred_fallthru
      _
    // Predicated region
    $region18: #{tpu_custom_call.1} parent=1 // pred_check
      _
    $region19: #{tpu_custom_call.1} parent=1 // pred_check_branch
      %49 = sbr.rel (0) target = $region21
    $region20: #{tpu_custom_call.1} parent=1 // pred_region
      %51 = dma.done [#allocation6], 256
    $region21: #{tpu_custom_call.1} parent=1 // pred_fallthru
      _
    // Predicated region
    $region22: #{tpu_custom_call.1} parent=1 // pred_check
      _
    $region23: #{tpu_custom_call.1} parent=1 // pred_check_branch
      %53 = sbr.rel (0) target = $region25
    $region24: #{tpu_custom_call.1} parent=1 // pred_region
      %55 = dma.done [#allocation6], 64
    $region25: #{tpu_custom_call.1} parent=1 // pred_fallthru
      _
    %v56 = vld [vmem:[#allocation2] sm:$0xff]
    %v57 = vld [vmem:[#allocation2 + $0x8] sm:$0xff]
    %v58 = vld [vmem:[#allocation5] sm:$0xff]
    %v59 = vld [vmem:[#allocation5 + $0x8] sm:$0xff]
    %v60 = vsub.f32 %v56, %v58
    %v61 = vsub.f32 %v57, %v59
    %62 = vrot.lane.b32.xlu0 %v60, 112
    %v63 = vpop.permute.xlu0 %62
    %64 = vrot.lane.b32.xlu0 %v61, 112
    %v65 = vpop.permute.xlu0 %64
    %v66 = vlaneseq
    %v67 = vand.u32 %v66, 127
    %vm68 = vcmp.lt.s32.totalorder %v67, 112
    %v69 = vsel %vm68, %v63, %v65
    %v70 = vsel %vm68, %v65, %v63
    %v71 = vsub.f32 %v69, %v60
    %v72 = vsub.f32 %v70, %v61
    %73 = vrot.lane.b32.xlu0 %v60, 127
    %v74 = vpop.permute.xlu0 %73
    %75 = vrot.lane.b32.xlu0 %v61, 127
    %v76 = vpop.permute.xlu0 %75
    %vm77 = vcmp.lt.s32.totalorder %v67, 127
    %v78 = vsel %vm77, %v74, %v76
    %v79 = vsel %vm77, %v76, %v74
    %v80 = vsub.f32 %v78, %v60
    %v81 = vsub.f32 %v79, %v61
    %v82 = vld [vmem:[#allocation7] ss:$2 sm:$0x3]
    %s83 = scalar_lea.vmem [#allocation7], 1
    %v84 = vld [vmem:[%s83] ss:$2 sm:$0x3]
    %v85 = vmul.f32 %v71, %v71
    %v86 = vmul.f32 %v72, %v72
    %v88 = vperm.slane %v82, 0
    %v89 = vperm.slane %v82, 1
    %v92 = vmul.f32 %v85, %v88
    %v93 = vmul.f32 %v86, %v89
    %v94 = vmul.f32 %v80, %v80
    %v95 = vmul.f32 %v81, %v81
    %v97 = vperm.slane %v84, 0
    %v98 = vperm.slane %v84, 1
    %v101 = vmul.f32 %v94, %v97
    %v102 = vmul.f32 %v95, %v98
    %v103 = vadd.f32 %v92, %v101
    %v104 = vadd.f32 %v93, %v102
    %v105 = vrot.slane %v103, 4
    %v106 = vadd.f32 %v103, %v105
    %v107 = vrot.slane %v106, 2
    %v108 = vadd.f32 %v106, %v107
    %v109 = vrot.slane %v108, 1
    %v110 = vadd.f32 %v108, %v109
    %v111 = vrot.slane %v104, 4
    %v112 = vadd.f32 %v104, %v111
    %v113 = vrot.slane %v112, 2
    %v114 = vadd.f32 %v112, %v113
    %v115 = vrot.slane %v114, 1
    %v116 = vadd.f32 %v114, %v115
    %v119 = vrot.slane %v116, 7
    %vm120 = vcmask 1040384
    %v121 = vsel %vm120, %v110, %v119
    %v123 = vlaneseq
    %vm124 = vcmp.ge.s32.totalorder %v123, 0
    %vm125 = vcmp.lt.s32.totalorder %v123, 256
    %vm126 = vmand %vm124, %vm125
    %127 = vst.msk [vmem:[#allocation8] sm:$0x3] %vm126, %v121
    // Predicated region
    $region26: #{tpu_custom_call.1} parent=1 // pred_check
      _
    $region27: #{tpu_custom_call.1} parent=1 // pred_check_branch
      %129 = sbr.rel (0) target = $region29
    $region28: #{tpu_custom_call.1} parent=1 // pred_region
      %131 = vsyncadd [#allocation4], 0
      %s133 = sshll.u32 [#allocation8], 4
      %s134 = int_to_ptr.vmem [resolvable:$true] %s133
      %s135 = sshll.u32 %s3, 4
      %s136 = int_to_ptr.hbm [resolvable:$true] %s135
      %138 = dma.vmem_to_hbm [thread:$0]  %s134, 32, %s136, [#allocation4]
    $region29: #{tpu_custom_call.1} parent=1 // pred_fallthru
      _
    // Predicated region
    $region30: #{tpu_custom_call.1} parent=1 // pred_check
      _
    $region31: #{tpu_custom_call.1} parent=1 // pred_check_branch
      %140 = sbr.rel (0) target = $region33
    $region32: #{tpu_custom_call.1} parent=1 // pred_region
      %142 = dma.done [#allocation4], 32
    $region33: #{tpu_custom_call.1} parent=1 // pred_fallthru
      _
    %143 = vsyncpa [#allocation3], 1
    %144 = vsyncpa [#allocation6], 1
    %145 = vsyncpa [#allocation4], 1

</llo_original>
